<compile_context>
chip_gen: v5e
topology: v5e:2x2
jax: 0.10.0
libtpu: 0.0.40
codegen_flags: <defaults>
</compile_context>

<pallas_src>
import jax
import jax.numpy as jnp
from jax import lax
from jax.experimental import pallas as pl
from jax.experimental.pallas import tpu as pltpu

_LANE = 128
_SUBLANE = 8


def _round_up(a: int, b: int) -> int:
    return ((a + b - 1) // b) * b


def _make_lse_kernel(tile_r: int, tile_l: int, L: int, lane_acc: bool):
    """Kernel closure; tile_r/tile_l/L/lane_acc are trace-time constants."""
    needs_mask = (L % tile_l) != 0

    def kernel(x_ref, o_ref, acc_ref):
        j = pl.program_id(1)

        @pl.when(j == 0)
        def _():
            acc_ref[...] = jnp.zeros_like(acc_ref)

        e = jnp.exp(x_ref[...].astype(jnp.float32))

        if needs_mask:
            # Only the last length block has out-of-bounds lanes; the compare
            # is trivially true elsewhere.  Select AFTER exp so garbage in the
            # OOB tail (possibly inf/NaN) never reaches the accumulator.
            col = j * tile_l + lax.broadcasted_iota(jnp.int32, (tile_r, tile_l), 1)
            e = jnp.where(col < L, e, 0.0)

        if lane_acc:
            # Lane-dense accumulate: pure VALU vreg adds, no per-step XLU work.
            acc_ref[...] += e.reshape(tile_r, tile_l // _LANE, _LANE).sum(axis=1)
        else:
            # Single short length block (tile_l == L < 128-aligned): direct reduce.
            acc_ref[...] += jnp.sum(e, axis=-1, keepdims=True)

        @pl.when(j == pl.num_programs(1) - 1)
        def _():
            s = jnp.sum(acc_ref[...], axis=-1, keepdims=True)
            o_ref[...] = jnp.log(s).astype(o_ref.dtype)

    return kernel


def logsumexp_pooling_1d(x: jax.Array, *, tile_r=None, tile_l=None) -> jax.Array:
    """x: (B, C, L) -> (B, C, 1), out = log(sum(exp(x), axis=-1, keepdims=True))."""
    B, C, L = x.shape
    rows = B * C
    x2d = x.reshape(rows, L)
    itemsize = jnp.dtype(x.dtype).itemsize
    out_itemsize = itemsize

    # Sublane packing granule for the row axis: 8 (f32) / 16 (bf16) / 32 (int8/fp8).
    row_granule = _SUBLANE * max(1, 4 // itemsize)

    # ~2 MiB per input buffer; Pallas double-buffers it (~4 MiB in flight).
    target_tile_bytes = 2 * 1024 * 1024

    # ---- length (reduction) tile: balanced, lane-aligned ---------------------
    if tile_l is None:
        # Cap so a >=64-row tile still fits the byte target.
        cap_l = max(_LANE, ((target_tile_bytes // (64 * itemsize)) // _LANE) * _LANE)
        if L <= cap_l:
            tile_l = L                      # single block; block dim == full dim is OK
        else:
            n_l = pl.cdiv(L, cap_l)
            tile_l = _round_up(pl.cdiv(L, n_l), _LANE)   # balanced, <= cap_l, >= 128
    else:
        tile_l = min(tile_l, L)
        if tile_l < L:
            tile_l = max(_LANE, (tile_l // _LANE) * _LANE)
    grid_l = pl.cdiv(L, tile_l)
    lane_acc = (tile_l % _LANE) == 0

    # ---- row (parallel) tile: VMEM-aware, balanced ---------------------------
    # In-flight VMEM accounting (lane-padded): 2 input buffers + f32 accumulator.
    row_bytes_in = _round_up(tile_l, _LANE) * itemsize
    per_row_in_flight = 2 * row_bytes_in + _LANE * 4
    vmem_budget = 12 * 1024 * 1024           # safe under v5e's 16 MiB default scoped VMEM

    if tile_r is None:
        tile_r = target_tile_bytes // max(1, row_bytes_in)
    max_tile_r = max(row_granule,
                     (vmem_budget // per_row_in_flight) // row_granule * row_granule)
    tile_r = max(row_granule, min(tile_r, max_tile_r, _round_up(rows, row_granule)))
    tile_r = (tile_r // row_granule) * row_granule

    # Balance row tiles (never increases tile_r).
    n_r = pl.cdiv(rows, tile_r)
    tile_r = min(tile_r, _round_up(pl.cdiv(rows, n_r), row_granule))

    # v7x megacore: keep >=2 tiles on the "parallel" axis when rows allow it.
    if pl.cdiv(rows, tile_r) < 2 and tile_r > row_granule:
        tile_r = max(row_granule, _round_up(pl.cdiv(rows, 2), row_granule))

    grid_r = pl.cdiv(rows, tile_r)
    grid = (grid_r, grid_l)

    acc_width = _LANE if lane_acc else 1
    kernel = _make_lse_kernel(tile_r, tile_l, L, lane_acc)

    cost = pl.CostEstimate(
        flops=rows * L,                      # reduction adds
        transcendentals=rows * L + rows,     # exp per element + log per row
        bytes_accessed=rows * L * itemsize + rows * out_itemsize,
    )

    out2d = pl.pallas_call(
        kernel,
        out_shape=jax.ShapeDtypeStruct((rows, 1), x.dtype),
        grid_spec=pltpu.PrefetchScalarGridSpec(
            num_scalar_prefetch=0,
            grid=grid,
            in_specs=[pl.BlockSpec((tile_r, tile_l), lambda i, j: (i, j))],
            out_specs=pl.BlockSpec((tile_r, 1), lambda i, j: (i, 0)),
            scratch_shapes=[pltpu.VMEM((tile_r, acc_width), jnp.float32)],
        ),
        compiler_params=pltpu.CompilerParams(
            dimension_semantics=("parallel", "arbitrary"),
        ),
        cost_estimate=cost,
    )(x2d)

    return out2d.reshape(B, C, 1)


def _reference(x):
    out = jnp.log(jnp.sum(jnp.exp(x.astype(jnp.float32)), axis=-1, keepdims=True))
    return out.astype(x.dtype)


if __name__ == "__main__":
    root = jax.random.PRNGKey(0)
    k0, k1, k2 = jax.random.split(root, 3)

    # Case 1: small shape consistent with the module (batch, channels, length).
    B, C, L = 2, 4, 16
    x = jax.random.normal(k0, (B, C, L), dtype=jnp.float32)
    out = jax.block_until_ready(logsumexp_pooling_1d(x))
    ref = _reference(x)
    assert out.shape == (B, C, 1), out.shape
    assert jnp.allclose(out, ref, atol=1e-5, rtol=1e-5), (out, ref)

    # Case 2: exercises in-kernel length-tail masking + row-edge handling
    # (rows = 6 -> one 8-row tile with 2 garbage rows discarded;
    #  L = 9000 -> two balanced 4608-wide reduction tiles, last one masked).
    B2, C2, L2 = 2, 3, 9000
    x2 = jax.random.normal(k1, (B2, C2, L2), dtype=jnp.float32)
    out2 = jax.block_until_ready(logsumexp_pooling_1d(x2))
    ref2 = _reference(x2)
    assert out2.shape == (B2, C2, 1), out2.shape
    assert jnp.allclose(out2, ref2, atol=1e-4, rtol=1e-4), (out2, ref2)

    # Case 3: bf16 input (packed row granule = 16), non-lane-aligned single block.
    B3, C3, L3 = 3, 5, 300
    x3 = jax.random.normal(k2, (B3, C3, L3), dtype=jnp.bfloat16)
    out3 = jax.block_until_ready(logsumexp_pooling_1d(x3))
    ref3 = _reference(x3)
    assert out3.shape == (B3, C3, 1), out3.shape
    assert jnp.allclose(out3.astype(jnp.float32), ref3.astype(jnp.float32),
                        atol=5e-2, rtol=5e-2), (out3, ref3)

    print("KERNEL_OK")
</pallas_src>

<mosaic_0001>
module attributes {stable_mosaic.version = 11 : i64} {
  func.func @kernel(%arg0: i32, %arg1: i32, %arg2: memref<8x16xf32, #tpu.memory_space<vmem>>, %arg3: memref<8x1xf32, #tpu.memory_space<vmem>>, %arg4: memref<8x1xf32, #tpu.memory_space<vmem>>) attributes {dimension_semantics = [#tpu.dimension_semantics<parallel>, #tpu.dimension_semantics<arbitrary>], iteration_bounds = array<i64: 1, 1>, scalar_prefetch = 0 : i64, scratch_operands = 1 : i64, tpu.core_type = #tpu.core_type<tc>, window_params = [{transform_indices = @transform_0, window_bounds = array<i64: 8, 16>}, {transform_indices = @transform_1, window_bounds = array<i64: 8, 1>}]} {
    %c0_i32 = arith.constant 0 : i32
    %0 = arith.cmpi eq, %arg1, %c0_i32 : i32
    %1 = arith.extui %0 : i1 to i32
    %c0_i32_0 = arith.constant 0 : i32
    %2 = arith.cmpi ne, %1, %c0_i32_0 : i32
    scf.if %2 {
      %cst_8 = arith.constant 0.000000e+00 : f32
      %13 = vector.broadcast %cst_8 : f32 to vector<8x1xf32>
      %c0_9 = arith.constant 0 : index
      %c0_10 = arith.constant 0 : index
      %14 = vector.load %arg4[%c0_9, %c0_10] : memref<8x1xf32, #tpu.memory_space<vmem>>, vector<8x1xf32>
      tpu.vector_store %arg4[%c0_9, %c0_10], %13 {strides = array<i32>} : memref<8x1xf32, #tpu.memory_space<vmem>>, vector<8x1xf32>,
    } else {
    }
    %c0 = arith.constant 0 : index
    %c0_1 = arith.constant 0 : index
    %3 = vector.load %arg2[%c0, %c0_1] : memref<8x16xf32, #tpu.memory_space<vmem>>, vector<8x16xf32>
    %4 = math.exp %3 : vector<8x16xf32>
    %c0_2 = arith.constant 0 : index
    %c0_3 = arith.constant 0 : index
    %5 = vector.load %arg4[%c0_2, %c0_3] : memref<8x1xf32, #tpu.memory_space<vmem>>, vector<8x1xf32>
    %cst = arith.constant dense<0.000000e+00> : vector<8xf32>
    %6 = vector.multi_reduction <add>, %4, %cst [1] : vector<8x16xf32> to vector<8xf32>
    %7 = vector.shape_cast %6 : vector<8xf32> to vector<8x1xf32>
    %8 = arith.addf %5, %7 : vector<8x1xf32>
    %c0_4 = arith.constant 0 : index
    %c0_5 = arith.constant 0 : index
    %9 = vector.load %arg4[%c0_4, %c0_5] : memref<8x1xf32, #tpu.memory_space<vmem>>, vector<8x1xf32>
    tpu.vector_store %arg4[%c0_4, %c0_5], %8 {strides = array<i32>} : memref<8x1xf32, #tpu.memory_space<vmem>>, vector<8x1xf32>,
    %c0_i32_6 = arith.constant 0 : i32
    %10 = arith.cmpi eq, %arg1, %c0_i32_6 : i32
    %11 = arith.extui %10 : i1 to i32
    %c0_i32_7 = arith.constant 0 : i32
    %12 = arith.cmpi ne, %11, %c0_i32_7 : i32
    scf.if %12 {
      %c0_8 = arith.constant 0 : index
      %c0_9 = arith.constant 0 : index
      %13 = vector.load %arg4[%c0_8, %c0_9] : memref<8x1xf32, #tpu.memory_space<vmem>>, vector<8x1xf32>
      %cst_10 = arith.constant dense<0.000000e+00> : vector<8xf32>
      %14 = vector.multi_reduction <add>, %13, %cst_10 [1] : vector<8x1xf32> to vector<8xf32>
      %15 = vector.shape_cast %14 : vector<8xf32> to vector<8x1xf32>
      %16 = math.log %15 : vector<8x1xf32>
      %c0_11 = arith.constant 0 : index
      %c0_12 = arith.constant 0 : index
      %17 = vector.load %arg3[%c0_11, %c0_12] : memref<8x1xf32, #tpu.memory_space<vmem>>, vector<8x1xf32>
      tpu.vector_store %arg3[%c0_11, %c0_12], %16 {strides = array<i32>} : memref<8x1xf32, #tpu.memory_space<vmem>>, vector<8x1xf32>,
    } else {
    }
    return
  }
  func.func @transform_0(%arg0: i32, %arg1: i32) -> (i32, i32) {
    %c0_i32 = arith.constant 0 : i32
    return %arg0, %arg1 : i32, i32
  }
  func.func @transform_1(%arg0: i32, %arg1: i32) -> (i32, i32) {
    %c0_i32 = arith.constant 0 : i32
    %c0_i32_0 = arith.constant 0 : i32
    return %arg0, %c0_i32 : i32, i32
  }
}

</mosaic_0001>

<llo_original>
// kernel: tpu_custom_call.1
$region0: #{tpu_custom_call.1}
  #allocation0 [shape = 'u32[]', space=smem, size = 0x4, offset = 0x4, fixed_abs, tag = 'smem constant byte address 0x4 - core index']
  #allocation1 [shape = 'u32[72,128]{1,0:T(1,128)}', space=vmem, size = 0x9000, scoped, tag = 'internal scratch']
  #allocation2 [shape = 'f32[8,1]{1,0:T(8,128)}', space=vmem, size = 0x1000, scoped, tag = 'scratch operand']
  %s0 = inlined_call_operand.hbm [shape: f32[8,16], index: 0, kind: input, shape index: {}]
  %s1 = inlined_call_operand.vmem [shape: f32[8,1], index: 1, kind: output, shape index: {}]
  %s2 = sld [smem:[#allocation0]]
  $region26: #{tpu_custom_call.1} parent=0
    _
  %s4 = ssub.s32 1, %s2
  %s5 = scalar_select 0, %s4, %s2
  $region1: #{tpu_custom_call.1} parent=0
    #allocation3 [shape = 'u8[4096]{0}', space=vmem, size = 0x1000, scoped, tag = 'input window, operand 0, single buffered']
    #allocation4 [shape = 's32[1]{0}', space=sflag, size = 0x4, scoped, tag = 'scoped memory for tpu_custom_call.1']
    %6 = vsyncpa [#allocation4], 0
    // Predicated region
    $region2: #{tpu_custom_call.1} parent=1 // pred_check
      _
    $region3: #{tpu_custom_call.1} parent=1 // pred_check_branch
      %8 = sbr.rel (0) target = $region5
    $region4: #{tpu_custom_call.1} parent=1 // pred_region
      %10 = vsyncadd [#allocation4], 0
      %s12 = sshll.u32 %s0, 4
      %s13 = int_to_ptr.hbm [resolvable:$true] %s12
      %s14 = sshll.u32 [#allocation3], 4
      %s15 = int_to_ptr.vmem [resolvable:$true] %s14
      %17 = dma.hbm_to_vmem [thread:$0]  %s13, 128, %s15, [#allocation4]
    $region5: #{tpu_custom_call.1} parent=1 // pred_fallthru
      _
    // Predicated region
    $region6: #{tpu_custom_call.1} parent=1 // pred_check
      _
    $region7: #{tpu_custom_call.1} parent=1 // pred_check_branch
      %19 = sbr.rel (0) target = $region9
    $region8: #{tpu_custom_call.1} parent=1 // pred_region
      %21 = dma.done [#allocation4], 128
    $region9: #{tpu_custom_call.1} parent=1 // pred_fallthru
      _
    %p22 = scmp.eq.s32.totalorder 0, 0
    // Predicated region
    $region10: #{tpu_custom_call.1} parent=1 // pred_check
      %p23 = pneg %p22
    $region11: #{tpu_custom_call.1} parent=1 // pred_check_branch
      %25 = sbr.rel (%p23) target = $region13
    $region12: #{tpu_custom_call.1} parent=1 // pred_region
      %vm26 = vcmask 7168
      %27 = vst.msk [vmem:[#allocation2] sm:$0xff] %vm26, 0.0
    $region13: #{tpu_custom_call.1} parent=1 // pred_fallthru
      _
    %v28 = vld [vmem:[#allocation3] sm:$0xff]
    %v29 = vmul.f32 %v28, 1.442695
    %v30 = vpow.pop %v29
    %v31 = vld [vmem:[#allocation2] sm:$0xff]
    %vm32 = vcmask 130048
    %v33 = vsel %vm32, %v30, 0.0
    %34 = vadd.xlane.f32.xlu0 %v33
    %v35 = vpop.xlane.xlu0 %34
    %v36 = vadd.f32 %v31, %v35
    %vm37 = vcmask 7168
    %38 = vst.msk [vmem:[#allocation2] sm:$0xff] %vm37, %v36
    // Predicated region
    $region14: #{tpu_custom_call.1} parent=1 // pred_check
      %p39 = pneg %p22
    $region15: #{tpu_custom_call.1} parent=1 // pred_check_branch
      %41 = sbr.rel (%p39) target = $region17
    $region16: #{tpu_custom_call.1} parent=1 // pred_region
      %v42 = vld [vmem:[#allocation2] sm:$0xff]
      %v43 = vadd.f32 %v42, 0.0
      %v44 = vlog2.pop %v43
      %v45 = vmul.f32 %v44, 0.6931472
      %46 = vst.msk [vmem:[%s1] sm:$0xff] %vm37, %v45
    $region17: #{tpu_custom_call.1} parent=1 // pred_fallthru
      _
    // Predicated region
    $region18: #{tpu_custom_call.1} parent=1 // pred_check
      _
    $region19: #{tpu_custom_call.1} parent=1 // pred_check_branch
      %48 = sbr.rel (0) target = $region21
    $region20: #{tpu_custom_call.1} parent=1 // pred_region
      _
    $region21: #{tpu_custom_call.1} parent=1 // pred_fallthru
      _
    // Predicated region
    $region22: #{tpu_custom_call.1} parent=1 // pred_check
      _
    $region23: #{tpu_custom_call.1} parent=1 // pred_check_branch
      %50 = sbr.rel (0) target = $region25
    $region24: #{tpu_custom_call.1} parent=1 // pred_region
      _
    $region25: #{tpu_custom_call.1} parent=1 // pred_fallthru
      _
    %51 = vsyncpa [#allocation4], 1

</llo_original>
